<compile_context>
chip_gen: v5e
topology: v5e:2x2
jax: 0.10.0
libtpu: 0.0.40
codegen_flags: <defaults>
</compile_context>

<pallas_src>
import numpy as np
import jax
import jax.numpy as jnp
from jax.experimental import pallas as pl
from jax.experimental.pallas import tpu as pltpu

# ---------------- static config (small shapes consistent with the module) ----------------
ACT_DIM = 5
OBS_DIM = 27                       # obs_dim >= 18 (goal slice starts at act_dim + 18)
GOAL_DIM = OBS_DIM - 18            # = 9   (matches x[:, -1, act_dim+18:] = goal)
INPUT_DIM = ACT_DIM + OBS_DIM      # = 32
T = 8
T_ACTION = 4
SAMPLING_STEPS = 4
HIDDEN = 32
BATCH = 2
COND_DIM = OBS_DIM + GOAL_DIM + 1  # obs + goal + returns = 37
BT = BATCH * T

assert HIDDEN == INPUT_DIM, "row-param packing below assumes HIDDEN == INPUT_DIM (= 32)"
assert (T & (T - 1)) == 0, "in-kernel keep-mask uses bitwise AND for `row % T`"

TIMESTEPS = np.linspace(0.0, 1.0, SAMPLING_STEPS + 1).astype(np.float32)  # static
_DTS = np.diff(TIMESTEPS)
assert np.allclose(_DTS, _DTS[0])          # torch.linspace => uniform spacing
DT = float(_DTS[0])                        # 0.25 (exact power of two for S=4)

# rows-array layout (all widths == 32): 0=dt*b2, 1=out_scale, 2=out_off, 3..3+S-1 = t_i*wt
_N_ROWS_USED = 3 + SAMPLING_STEPS
_N_ROWS = ((_N_ROWS_USED + 7) // 8) * 8    # pad to a full sublane tile (= 8)


# ---------------------------------- Pallas kernel ----------------------------------------
def policy_forward_kernel(data_ref, w_ref, rows_ref, o_ref):
    """Whole Euler sampler + inpaint + normalizer finalize, all resident in VMEM.

    data_ref: (3, B*T, D) f32   [0]=initial noise x0, [1]=inpaint values, [2]=cond_emb + b1
    w_ref:    (2, D, H)  bf16   [0]=w1, [1]=dt*w2   (dt folded in; uniform linspace spacing)
    rows_ref: (8, D)     f32    row 0 = dt*b2, 1 = out_scale, 2 = out_off,
                                rows 3..3+S-1 = t_i * wt (per-step time bias)
    o_ref:    (B*T, D)   f32
    """
    x = data_ref[0]
    vals = data_ref[1]
    cemb = data_ref[2]                      # cond_emb + b1, already broadcast over T
    w1 = w_ref[0]                           # (D, H) bf16
    w2s = w_ref[1]                          # (H, D) bf16, dt folded in
    b2s = rows_ref[0:1, :]                  # (1, D)
    out_scale = rows_ref[1:2, :]
    out_off = rows_ref[2:3, :]

    # `keep` inpainting mask generated in-kernel (trace-time-constant pattern, no HBM traffic):
    # row r = b*T + t ; keep==0 where (t==0 and d>=ACT_DIM) or (t==T-1 and d>=ACT_DIM+18).
    row = jax.lax.broadcasted_iota(jnp.int32, (BT, INPUT_DIM), 0)
    col = jax.lax.broadcasted_iota(jnp.int32, (BT, INPUT_DIM), 1)
    t_idx = jnp.bitwise_and(row, T - 1)     # row % T (T is a power of two)
    inpaint_obs = (t_idx == 0) & (col >= ACT_DIM)
    inpaint_goal = (t_idx == T - 1) & (col >= ACT_DIM + 18)
    keep = jnp.where(inpaint_obs | inpaint_goal, 0.0, 1.0)

    # Euler flow-matching sampler (guide_scale == 0, use_refinement == False).
    # Serial chain per step: inpaint -> dot(bf16) -> +bias -> tanh -> dot(bf16) -> +.
    for i in range(SAMPLING_STEPS):
        x = x * keep + vals                                            # inpaint
        pre = jnp.dot(x.astype(jnp.bfloat16), w1,
                      preferred_element_type=jnp.float32)              # single-pass MXU
        h = jnp.tanh(pre + cemb + rows_ref[3 + i:4 + i, :])            # cond + b1 + t_i*wt
        x = x + jnp.dot(h.astype(jnp.bfloat16), w2s,
                        preferred_element_type=jnp.float32) + b2s      # x += dt*(h@w2 + b2)

    x = x * keep + vals                                                # final inpaint
    x = jnp.clip(x, -1.0, 1.0)                                         # normalizer.clip
    o_ref[...] = x * out_scale + out_off                               # inverse_scale_output


def policy_forward_pallas(data, w, rows):
    vmem = pl.BlockSpec(memory_space=pltpu.MemorySpace.VMEM)
    out = pl.pallas_call(
        policy_forward_kernel,
        out_shape=jax.ShapeDtypeStruct((BT, INPUT_DIM), jnp.float32),
        in_specs=[vmem, vmem, vmem],
        out_specs=vmem,
    )(data, w, rows)
    return out.reshape(BATCH, T, INPUT_DIM)


# ---------------------------------- pure-JAX reference -----------------------------------
def policy_forward_ref(x0, keep, vals, cemb_bt, step_rows, params):
    """Same math, same operand precision (bf16 dot operands, f32 accumulate)."""
    x = x0
    w1 = params["w1"].astype(jnp.bfloat16)
    w2s = (DT * params["w2"]).astype(jnp.bfloat16)
    b2s = DT * params["b2"]
    for i in range(SAMPLING_STEPS):
        x = x * keep + vals
        h = jnp.tanh(jnp.dot(x.astype(jnp.bfloat16), w1,
                             preferred_element_type=jnp.float32)
                     + cemb_bt + step_rows[i:i + 1])
        x = x + jnp.dot(h.astype(jnp.bfloat16), w2s,
                        preferred_element_type=jnp.float32) + b2s
    x = x * keep + vals
    x = jnp.clip(x, -1.0, 1.0)
    x = x * params["out_scale"] + params["out_off"]
    return x.reshape(BATCH, T, INPUT_DIM)


# ---------------------------------- glue: Policy.act() -----------------------------------
def make_params(key):
    ks = jax.random.split(key, 8)
    p = {
        # stand-in ConditionalUnet1D parameters
        "w1": jax.random.normal(ks[0], (INPUT_DIM, HIDDEN), jnp.float32) * 0.1,
        "b1": jax.random.normal(ks[1], (1, HIDDEN), jnp.float32) * 0.05,
        "wt": jax.random.normal(ks[2], (1, HIDDEN), jnp.float32) * 0.1,
        "wc": jax.random.normal(ks[3], (COND_DIM, HIDDEN), jnp.float32) * 0.1,
        "w2": jax.random.normal(ks[4], (HIDDEN, INPUT_DIM), jnp.float32) * 0.1,
        "b2": jax.random.normal(ks[5], (1, INPUT_DIM), jnp.float32) * 0.05,
        # synthetic Normalizer parameters (deterministic affines)
        "out_scale": 1.0 + 0.1 * jax.random.normal(ks[6], (1, INPUT_DIM), jnp.float32),
        "out_off": 0.05 * jax.random.normal(ks[7], (1, INPUT_DIM), jnp.float32),
        "in_scale": jnp.full((OBS_DIM,), 0.5, jnp.float32),
        "in_off": jnp.zeros((OBS_DIM,), jnp.float32),
        "goal_scale": jnp.full((GOAL_DIM,), 0.5, jnp.float32),
        "goal_off": jnp.zeros((GOAL_DIM,), jnp.float32),
    }
    return p


def policy_act(obs_raw, goal_raw, params, noise_key, *, use_pallas=True):
    """Replicates Policy.act(): process() -> forward() -> slice action / obs_traj.

    Run under a single jax.jit so all preprocessing fuses into one XLA fusion that
    feeds the single pallas_call (3 input arrays, 1 output array).
    """
    B = obs_raw.shape[0]
    # process(): normalizer.scale_input / scale_9d_pos, returns = ones
    obs_s = (obs_raw - params["in_off"]) * params["in_scale"]          # (B, OBS_DIM)
    goal_s = (goal_raw - params["goal_off"]) * params["goal_scale"]    # (B, GOAL_DIM)
    returns = jnp.ones((B, 1), jnp.float32)

    # initial noise (torch.randn equivalent)
    x0 = jax.random.normal(noise_key, (B, T, INPUT_DIM), jnp.float32).reshape(BT, INPUT_DIM)

    # inpainting values (trace-time constant masks + tiny fused elementwise setup)
    m_obs = np.zeros((T, INPUT_DIM), np.float32); m_obs[0, ACT_DIM:] = 1.0
    m_goal = np.zeros((T, INPUT_DIM), np.float32); m_goal[T - 1, ACT_DIM + 18:] = 1.0
    obs_pad = jnp.concatenate([jnp.zeros((B, ACT_DIM), jnp.float32), obs_s], axis=-1)
    goal_pad = jnp.concatenate([jnp.zeros((B, ACT_DIM + 18), jnp.float32), goal_s], axis=-1)
    vals = (jnp.asarray(m_obs)[None] * obs_pad[:, None, :] +
            jnp.asarray(m_goal)[None] * goal_pad[:, None, :]).reshape(BT, INPUT_DIM)

    # time-invariant conditioning: embed the (B, C) rows once (not a T-repeated copy),
    # fold in b1, broadcast over T.  This one (2,37)@(37,32) dot lives in the XLA
    # preprocessing fusion, off the kernel's serial chain.
    cond = jnp.concatenate([obs_s, goal_s, returns], axis=-1)          # (B, C)
    cond_emb = cond @ params["wc"] + params["b1"]                      # (B, H)
    cemb_bt = jnp.broadcast_to(cond_emb[:, None, :],
                               (B, T, HIDDEN)).reshape(BT, HIDDEN)     # (BT, H)

    t_vec = jnp.asarray(TIMESTEPS[:SAMPLING_STEPS])                    # (S,) left endpoints
    step_rows = t_vec[:, None] * params["wt"]                          # (S, H) per-step t_i*wt

    if use_pallas:
        data = jnp.stack([x0, vals, cemb_bt], axis=0)                  # (3, BT, 32) f32
        w = jnp.stack([params["w1"], DT * params["w2"]],
                      axis=0).astype(jnp.bfloat16)                     # (2, 32, 32) bf16
        rows = jnp.concatenate(
            [DT * params["b2"], params["out_scale"], params["out_off"], step_rows,
             jnp.zeros((_N_ROWS - _N_ROWS_USED, INPUT_DIM), jnp.float32)],
            axis=0)                                                    # (8, 32) f32
        x = policy_forward_pallas(data, w, rows)                       # (B, T, D)
    else:
        keep_td = np.ones((T, INPUT_DIM), np.float32)
        keep_td[0, ACT_DIM:] = 0.0
        keep_td[T - 1, ACT_DIM + 18:] = 0.0
        keep = jnp.asarray(np.tile(keep_td, (B, 1)))                   # (BT, D)
        x = policy_forward_ref(x0, keep, vals, cemb_bt, step_rows, params)

    action = x[:, :T_ACTION, :ACT_DIM]
    obs_traj = x[:, :, ACT_DIM:]
    return action, obs_traj, x


# ------------------------------------------ main -----------------------------------------
if __name__ == "__main__":
    root = jax.random.PRNGKey(0)
    k_param, k_obs, k_goal, k_noise = jax.random.split(root, 4)

    params = make_params(k_param)
    obs = jax.random.normal(k_obs, (BATCH, OBS_DIM), jnp.float32)
    goal = jax.random.normal(k_goal, (BATCH, GOAL_DIM), jnp.float32)

    # Single jit over the full act() path: preprocessing fuses into one XLA fusion
    # feeding the single pallas_call.
    act_fn = jax.jit(policy_act, static_argnames=("use_pallas",))

    action, obs_traj, x_pal = act_fn(obs, goal, params, k_noise, use_pallas=True)
    jax.block_until_ready(x_pal)

    # correctness check against a pure-JAX reference using the same dot-operand precision
    _, _, x_ref = act_fn(obs, goal, params, k_noise, use_pallas=False)
    np.testing.assert_allclose(np.asarray(x_pal), np.asarray(x_ref), rtol=1e-3, atol=1e-3)
    assert action.shape == (BATCH, T_ACTION, ACT_DIM)
    assert obs_traj.shape == (BATCH, T, OBS_DIM)

    print("KERNEL_OK")
</pallas_src>

<mosaic_0001>
module attributes {stable_mosaic.version = 11 : i64} {
  func.func @policy_forward_kernel(%arg0: memref<3x16x32xf32, #tpu.memory_space<vmem>>, %arg1: memref<2x32x32xbf16, #tpu.memory_space<vmem>>, %arg2: memref<8x32xf32, #tpu.memory_space<vmem>>, %arg3: memref<16x32xf32, #tpu.memory_space<vmem>>) attributes {dimension_semantics = [], scalar_prefetch = 0 : i64, scratch_operands = 0 : i64, tpu.core_type = #tpu.core_type<tc>} {
    %c0 = arith.constant 0 : index
    %c0_0 = arith.constant 0 : index
    %c0_1 = arith.constant 0 : index
    %0 = vector.load %arg0[%c0, %c0_0, %c0_1] : memref<3x16x32xf32, #tpu.memory_space<vmem>>, vector<1x16x32xf32>
    %1 = vector.shape_cast %0 : vector<1x16x32xf32> to vector<16x32xf32>
    %c1 = arith.constant 1 : index
    %c0_2 = arith.constant 0 : index
    %c0_3 = arith.constant 0 : index
    %2 = vector.load %arg0[%c1, %c0_2, %c0_3] : memref<3x16x32xf32, #tpu.memory_space<vmem>>, vector<1x16x32xf32>
    %3 = vector.shape_cast %2 : vector<1x16x32xf32> to vector<16x32xf32>
    %c2 = arith.constant 2 : index
    %c0_4 = arith.constant 0 : index
    %c0_5 = arith.constant 0 : index
    %4 = vector.load %arg0[%c2, %c0_4, %c0_5] : memref<3x16x32xf32, #tpu.memory_space<vmem>>, vector<1x16x32xf32>
    %5 = vector.shape_cast %4 : vector<1x16x32xf32> to vector<16x32xf32>
    %c0_6 = arith.constant 0 : index
    %c0_7 = arith.constant 0 : index
    %c0_8 = arith.constant 0 : index
    %6 = vector.load %arg1[%c0_6, %c0_7, %c0_8] : memref<2x32x32xbf16, #tpu.memory_space<vmem>>, vector<1x32x32xbf16>
    %7 = vector.shape_cast %6 : vector<1x32x32xbf16> to vector<32x32xbf16>
    %c1_9 = arith.constant 1 : index
    %c0_10 = arith.constant 0 : index
    %c0_11 = arith.constant 0 : index
    %8 = vector.load %arg1[%c1_9, %c0_10, %c0_11] : memref<2x32x32xbf16, #tpu.memory_space<vmem>>, vector<1x32x32xbf16>
    %9 = vector.shape_cast %8 : vector<1x32x32xbf16> to vector<32x32xbf16>
    %c0_12 = arith.constant 0 : index
    %c0_13 = arith.constant 0 : index
    %10 = vector.load %arg2[%c0_12, %c0_13] : memref<8x32xf32, #tpu.memory_space<vmem>>, vector<1x32xf32>
    %c1_14 = arith.constant 1 : index
    %c0_15 = arith.constant 0 : index
    %11 = vector.load %arg2[%c1_14, %c0_15] : memref<8x32xf32, #tpu.memory_space<vmem>>, vector<1x32xf32>
    %c2_16 = arith.constant 2 : index
    %c0_17 = arith.constant 0 : index
    %12 = vector.load %arg2[%c2_16, %c0_17] : memref<8x32xf32, #tpu.memory_space<vmem>>, vector<1x32xf32>
    %13 = tpu.iota {dimensions = array<i32: 0>} : vector<16x32xi32>
    %14 = tpu.iota {dimensions = array<i32: 1>} : vector<16x32xi32>
    %c7_i32 = arith.constant 7 : i32
    %15 = vector.broadcast %c7_i32 : i32 to vector<16x32xi32>
    %16 = arith.andi %13, %15 : vector<16x32xi32>
    %c0_i32 = arith.constant 0 : i32
    %17 = vector.broadcast %c0_i32 : i32 to vector<16x32xi32>
    %18 = arith.cmpi eq, %16, %17 : vector<16x32xi32>
    %c5_i32 = arith.constant 5 : i32
    %19 = vector.broadcast %c5_i32 : i32 to vector<16x32xi32>
    %20 = arith.cmpi sge, %14, %19 : vector<16x32xi32>
    %21 = arith.andi %18, %20 : vector<16x32xi1>
    %c7_i32_18 = arith.constant 7 : i32
    %22 = vector.broadcast %c7_i32_18 : i32 to vector<16x32xi32>
    %23 = arith.cmpi eq, %16, %22 : vector<16x32xi32>
    %c23_i32 = arith.constant 23 : i32
    %24 = vector.broadcast %c23_i32 : i32 to vector<16x32xi32>
    %25 = arith.cmpi sge, %14, %24 : vector<16x32xi32>
    %26 = arith.andi %23, %25 : vector<16x32xi1>
    %27 = arith.ori %21, %26 : vector<16x32xi1>
    %cst = arith.constant 0.000000e+00 : f32
    %cst_19 = arith.constant 1.000000e+00 : f32
    %28 = vector.broadcast %cst : f32 to vector<16x32xf32>
    %29 = vector.broadcast %cst_19 : f32 to vector<16x32xf32>
    %30 = arith.select %27, %28, %29 : vector<16x32xi1>, vector<16x32xf32>
    %31 = arith.mulf %1, %30 : vector<16x32xf32>
    %32 = arith.addf %31, %3 : vector<16x32xf32>
    %33 = arith.truncf %32 : vector<16x32xf32> to vector<16x32xbf16>
    %cst_20 = arith.constant dense<0.000000e+00> : vector<16x32xf32>
    %34 = tpu.matmul %33, %7, %cst_20 {dimension_numbers = #tpu.dot_dimension_numbers<[1], [0], [0], [1], [0, 0, 1, 1], [], []>} : vector<16x32xbf16>, vector<32x32xbf16>, vector<16x32xf32> -> vector<16x32xf32>
    %35 = arith.addf %34, %5 : vector<16x32xf32>
    %c3 = arith.constant 3 : index
    %c0_21 = arith.constant 0 : index
    %36 = vector.load %arg2[%c3, %c0_21] : memref<8x32xf32, #tpu.memory_space<vmem>>, vector<1x32xf32>
    %37 = vector.broadcast %36 : vector<1x32xf32> to vector<16x32xf32>
    %38 = arith.addf %35, %37 : vector<16x32xf32>
    %39 = math.tanh %38 : vector<16x32xf32>
    %40 = arith.truncf %39 : vector<16x32xf32> to vector<16x32xbf16>
    %cst_22 = arith.constant dense<0.000000e+00> : vector<16x32xf32>
    %41 = tpu.matmul %40, %9, %cst_22 {dimension_numbers = #tpu.dot_dimension_numbers<[1], [0], [0], [1], [0, 0, 1, 1], [], []>} : vector<16x32xbf16>, vector<32x32xbf16>, vector<16x32xf32> -> vector<16x32xf32>
    %42 = arith.addf %32, %41 : vector<16x32xf32>
    %43 = vector.broadcast %10 : vector<1x32xf32> to vector<16x32xf32>
    %44 = arith.addf %42, %43 : vector<16x32xf32>
    %45 = arith.mulf %44, %30 : vector<16x32xf32>
    %46 = arith.addf %45, %3 : vector<16x32xf32>
    %47 = arith.truncf %46 : vector<16x32xf32> to vector<16x32xbf16>
    %cst_23 = arith.constant dense<0.000000e+00> : vector<16x32xf32>
    %48 = tpu.matmul %47, %7, %cst_23 {dimension_numbers = #tpu.dot_dimension_numbers<[1], [0], [0], [1], [0, 0, 1, 1], [], []>} : vector<16x32xbf16>, vector<32x32xbf16>, vector<16x32xf32> -> vector<16x32xf32>
    %49 = arith.addf %48, %5 : vector<16x32xf32>
    %c4 = arith.constant 4 : index
    %c0_24 = arith.constant 0 : index
    %50 = vector.load %arg2[%c4, %c0_24] : memref<8x32xf32, #tpu.memory_space<vmem>>, vector<1x32xf32>
    %51 = vector.broadcast %50 : vector<1x32xf32> to vector<16x32xf32>
    %52 = arith.addf %49, %51 : vector<16x32xf32>
    %53 = math.tanh %52 : vector<16x32xf32>
    %54 = arith.truncf %53 : vector<16x32xf32> to vector<16x32xbf16>
    %cst_25 = arith.constant dense<0.000000e+00> : vector<16x32xf32>
    %55 = tpu.matmul %54, %9, %cst_25 {dimension_numbers = #tpu.dot_dimension_numbers<[1], [0], [0], [1], [0, 0, 1, 1], [], []>} : vector<16x32xbf16>, vector<32x32xbf16>, vector<16x32xf32> -> vector<16x32xf32>
    %56 = arith.addf %46, %55 : vector<16x32xf32>
    %57 = vector.broadcast %10 : vector<1x32xf32> to vector<16x32xf32>
    %58 = arith.addf %56, %57 : vector<16x32xf32>
    %59 = arith.mulf %58, %30 : vector<16x32xf32>
    %60 = arith.addf %59, %3 : vector<16x32xf32>
    %61 = arith.truncf %60 : vector<16x32xf32> to vector<16x32xbf16>
    %cst_26 = arith.constant dense<0.000000e+00> : vector<16x32xf32>
    %62 = tpu.matmul %61, %7, %cst_26 {dimension_numbers = #tpu.dot_dimension_numbers<[1], [0], [0], [1], [0, 0, 1, 1], [], []>} : vector<16x32xbf16>, vector<32x32xbf16>, vector<16x32xf32> -> vector<16x32xf32>
    %63 = arith.addf %62, %5 : vector<16x32xf32>
    %c5 = arith.constant 5 : index
    %c0_27 = arith.constant 0 : index
    %64 = vector.load %arg2[%c5, %c0_27] : memref<8x32xf32, #tpu.memory_space<vmem>>, vector<1x32xf32>
    %65 = vector.broadcast %64 : vector<1x32xf32> to vector<16x32xf32>
    %66 = arith.addf %63, %65 : vector<16x32xf32>
    %67 = math.tanh %66 : vector<16x32xf32>
    %68 = arith.truncf %67 : vector<16x32xf32> to vector<16x32xbf16>
    %cst_28 = arith.constant dense<0.000000e+00> : vector<16x32xf32>
    %69 = tpu.matmul %68, %9, %cst_28 {dimension_numbers = #tpu.dot_dimension_numbers<[1], [0], [0], [1], [0, 0, 1, 1], [], []>} : vector<16x32xbf16>, vector<32x32xbf16>, vector<16x32xf32> -> vector<16x32xf32>
    %70 = arith.addf %60, %69 : vector<16x32xf32>
    %71 = vector.broadcast %10 : vector<1x32xf32> to vector<16x32xf32>
    %72 = arith.addf %70, %71 : vector<16x32xf32>
    %73 = arith.mulf %72, %30 : vector<16x32xf32>
    %74 = arith.addf %73, %3 : vector<16x32xf32>
    %75 = arith.truncf %74 : vector<16x32xf32> to vector<16x32xbf16>
    %cst_29 = arith.constant dense<0.000000e+00> : vector<16x32xf32>
    %76 = tpu.matmul %75, %7, %cst_29 {dimension_numbers = #tpu.dot_dimension_numbers<[1], [0], [0], [1], [0, 0, 1, 1], [], []>} : vector<16x32xbf16>, vector<32x32xbf16>, vector<16x32xf32> -> vector<16x32xf32>
    %77 = arith.addf %76, %5 : vector<16x32xf32>
    %c6 = arith.constant 6 : index
    %c0_30 = arith.constant 0 : index
    %78 = vector.load %arg2[%c6, %c0_30] : memref<8x32xf32, #tpu.memory_space<vmem>>, vector<1x32xf32>
    %79 = vector.broadcast %78 : vector<1x32xf32> to vector<16x32xf32>
    %80 = arith.addf %77, %79 : vector<16x32xf32>
    %81 = math.tanh %80 : vector<16x32xf32>
    %82 = arith.truncf %81 : vector<16x32xf32> to vector<16x32xbf16>
    %cst_31 = arith.constant dense<0.000000e+00> : vector<16x32xf32>
    %83 = tpu.matmul %82, %9, %cst_31 {dimension_numbers = #tpu.dot_dimension_numbers<[1], [0], [0], [1], [0, 0, 1, 1], [], []>} : vector<16x32xbf16>, vector<32x32xbf16>, vector<16x32xf32> -> vector<16x32xf32>
    %84 = arith.addf %74, %83 : vector<16x32xf32>
    %85 = vector.broadcast %10 : vector<1x32xf32> to vector<16x32xf32>
    %86 = arith.addf %84, %85 : vector<16x32xf32>
    %87 = arith.mulf %86, %30 : vector<16x32xf32>
    %88 = arith.addf %87, %3 : vector<16x32xf32>
    %cst_32 = arith.constant -1.000000e+00 : f32
    %cst_33 = arith.constant 1.000000e+00 : f32
    %89 = vector.broadcast %cst_32 : f32 to vector<16x32xf32>
    %90 = arith.maximumf %89, %88 : vector<16x32xf32>
    %91 = vector.broadcast %cst_33 : f32 to vector<16x32xf32>
    %92 = arith.minimumf %91, %90 : vector<16x32xf32>
    %93 = vector.broadcast %11 : vector<1x32xf32> to vector<16x32xf32>
    %94 = arith.mulf %92, %93 : vector<16x32xf32>
    %95 = vector.broadcast %12 : vector<1x32xf32> to vector<16x32xf32>
    %96 = arith.addf %94, %95 : vector<16x32xf32>
    %c0_34 = arith.constant 0 : index
    %c0_35 = arith.constant 0 : index
    %97 = vector.load %arg3[%c0_34, %c0_35] : memref<16x32xf32, #tpu.memory_space<vmem>>, vector<16x32xf32>
    tpu.vector_store %arg3[%c0_34, %c0_35], %96 {strides = array<i32>} : memref<16x32xf32, #tpu.memory_space<vmem>>, vector<16x32xf32>,
    return
  }
}

</mosaic_0001>

<llo_original>
// kernel: policy_act.1
$region0: #{policy_act.1}
  #allocation0 [shape = 'u32[]', space=smem, size = 0x4, offset = 0x4, fixed_abs, tag = 'smem constant byte address 0x4 - core index']
  #allocation1 [shape = 'u32[72,128]{1,0:T(1,128)}', space=vmem, size = 0x9000, scoped, tag = 'internal scratch']
  %s0 = inlined_call_operand.vmem [shape: f32[3,16,32], index: 0, kind: input, shape index: {}]
  %s1 = inlined_call_operand.vmem [shape: bf16[2,32,32], index: 1, kind: input, shape index: {}]
  %s2 = inlined_call_operand.vmem [shape: f32[8,32], index: 2, kind: input, shape index: {}]
  %s3 = inlined_call_operand.vmem [shape: f32[16,32], index: 3, kind: output, shape index: {}]
  %s4 = sld [smem:[#allocation0]]
  $region22: #{policy_act.1} parent=0
    _
  %s6 = ssub.s32 1, %s4
  %s7 = scalar_select 0, %s6, %s4
  // Predicated region
  $region2: #{policy_act.1} parent=0 // pred_check
    _
  $region3: #{policy_act.1} parent=0 // pred_check_branch
    %9 = sbr.rel (0) target = $region5
  $region4: #{policy_act.1} parent=0 // pred_region
    _
  $region5: #{policy_act.1} parent=0 // pred_fallthru
    _
  // Predicated region
  $region6: #{policy_act.1} parent=0 // pred_check
    _
  $region7: #{policy_act.1} parent=0 // pred_check_branch
    %11 = sbr.rel (0) target = $region9
  $region8: #{policy_act.1} parent=0 // pred_region
    _
  $region9: #{policy_act.1} parent=0 // pred_fallthru
    _
  // Predicated region
  $region10: #{policy_act.1} parent=0 // pred_check
    _
  $region11: #{policy_act.1} parent=0 // pred_check_branch
    %13 = sbr.rel (0) target = $region13
  $region12: #{policy_act.1} parent=0 // pred_region
    _
  $region13: #{policy_act.1} parent=0 // pred_fallthru
    _
  %v15 = vld [vmem:[%s0] sm:$0xff]
  %v16 = vld [vmem:[%s0 + $0x8] sm:$0xff]
  %s17 = scalar_lea.vmem %s0, 16
  %v18 = vld [vmem:[%s17] sm:$0xff]
  %v19 = vld [vmem:[%s17 + $0x8] sm:$0xff]
  %s20 = scalar_lea.vmem %s0, 32
  %v21 = vld [vmem:[%s20] sm:$0xff]
  %v22 = vld [vmem:[%s20 + $0x8] sm:$0xff]
  %v23 = vld [vmem:[%s1] sm:$0xf]
  %v24 = vld [vmem:[%s1 + $0x4] sm:$0xf]
  %v25 = vld [vmem:[%s1 + $0x8] sm:$0xf]
  %v26 = vld [vmem:[%s1 + $0xc] sm:$0xf]
  %s27 = scalar_lea.vmem %s1, 16
  %v28 = vld [vmem:[%s27] sm:$0xf]
  %v29 = vld [vmem:[%s27 + $0x4] sm:$0xf]
  %v30 = vld [vmem:[%s27 + $0x8] sm:$0xf]
  %v31 = vld [vmem:[%s27 + $0xc] sm:$0xf]
  %v32 = vld [vmem:[%s2] sm:$0x1]
  %v33 = vld [vmem:[%s2 + $0x1] sm:$0x1]
  %v34 = vld [vmem:[%s2 + $0x2] sm:$0x1]
  %v35 = vlaneseq
  %v36 = vshrl.u32 %v35, 7
  %v37 = vadd.s32 %v36, 8
  %v38 = vlaneseq
  %v39 = vand.u32 %v38, 127
  %v40 = vand.u32 %v36, 7
  %v41 = vand.u32 %v37, 7
  %vm42 = vcmp.eq.s32.totalorder %v40, 0
  %vm43 = vcmp.eq.s32.totalorder %v41, 0
  %vm44 = vcmp.ge.s32.totalorder %v39, 5
  %vm45 = vmand %vm42, %vm44
  %vm46 = vmand %vm43, %vm44
  %vm47 = vcmp.eq.s32.totalorder %v40, 7
  %vm48 = vcmp.eq.s32.totalorder %v41, 7
  %vm49 = vcmp.ge.s32.totalorder %v39, 23
  %vm50 = vmand %vm47, %vm49
  %vm51 = vmand %vm48, %vm49
  %vm52 = vmor %vm45, %vm50
  %vm53 = vmor %vm46, %vm51
  %v54 = vsel %vm52, 0.0, 1.0
  %v55 = vsel %vm53, 0.0, 1.0
  %v56 = vmul.f32 %v15, %v54
  %v57 = vmul.f32 %v16, %v55
  %v58 = vadd.f32 %v56, %v18
  %v59 = vadd.f32 %v57, %v19
  %v60 = vpack.c.bf16 %v59, %v58
  %v65 = vunpack.c.l.b16 %v23
  %v66 = vunpack.c.l.b16 %v24
  %v67 = vunpack.c.l.b16 %v25
  %v68 = vunpack.c.l.b16 %v26
  %v69 = vpack.c.b16 %v66, %v65
  %v70 = vpack.c.b16 %v68, %v67
  %vm73 = vcmask 261120
  %v75 = vsel %vm73, %v60, 0
  %77 = vmatpush.bf16.msra.mxu0 0
  %78 = vmatpush.bf16.msra.mxu0 0
  %79 = vmatpush.bf16.msra.mxu0 0
  %80 = vmatpush.bf16.msra.mxu0 0
  %81 = vmatpush.bf16.msra.mxu0 0
  %82 = vmatpush.bf16.msra.mxu0 0
  %83 = vmatpush.bf16.msra.mxu0 %v70
  %84 = vmatpush.bf16.msra.mxu0 %v69
  %85 = vmatmul.bf16.gmra.mxu0 %v75
  %v86 = vpop.f32.mrf.mxu0
  %v87 = vadd.f32 %v21, %v86
  %v88 = vpop.f32.mrf.mxu0
  %v89 = vadd.f32 %v22, %v88
  %90 = vdwg.mxu0
  %v91 = vld [vmem:[%s2 + $0x3] sm:$0x1]
  %v92 = vperm.slane %v91, 0
  %v93 = vadd.f32 %v87, %v92
  %v94 = vadd.f32 %v89, %v92
  %v95 = vtanh.pop %v93
  %v96 = vtanh.pop %v94
  %v97 = vpack.c.bf16 %v96, %v95
  %v102 = vunpack.c.l.b16 %v28
  %v103 = vunpack.c.l.b16 %v29
  %v104 = vunpack.c.l.b16 %v30
  %v105 = vunpack.c.l.b16 %v31
  %v106 = vpack.c.b16 %v103, %v102
  %v107 = vpack.c.b16 %v105, %v104
  %v111 = vsel %vm73, %v97, 0
  %113 = vmatpush.bf16.msra.mxu0 0
  %114 = vmatpush.bf16.msra.mxu0 0
  %115 = vmatpush.bf16.msra.mxu0 0
  %116 = vmatpush.bf16.msra.mxu0 0
  %117 = vmatpush.bf16.msra.mxu0 0
  %118 = vmatpush.bf16.msra.mxu0 0
  %119 = vmatpush.bf16.msra.mxu0 %v107
  %120 = vmatpush.bf16.msra.mxu0 %v106
  %121 = vmatmul.bf16.gmra.mxu0 %v111
  %v122 = vpop.f32.mrf.mxu0
  %v123 = vadd.f32 0.0, %v122
  %v124 = vpop.f32.mrf.mxu0
  %v125 = vadd.f32 0.0, %v124
  %126 = vdwg.mxu0
  %v127 = vadd.f32 %v58, %v123
  %v128 = vadd.f32 %v59, %v125
  %v129 = vperm.slane %v32, 0
  %v130 = vadd.f32 %v127, %v129
  %v131 = vadd.f32 %v128, %v129
  %v132 = vmul.f32 %v130, %v54
  %v133 = vmul.f32 %v131, %v55
  %v134 = vadd.f32 %v132, %v18
  %v135 = vadd.f32 %v133, %v19
  %v136 = vpack.c.bf16 %v135, %v134
  %v138 = vsel %vm73, %v136, 0
  %140 = vmatpush.bf16.msra.mxu0 0
  %141 = vmatpush.bf16.msra.mxu0 0
  %142 = vmatpush.bf16.msra.mxu0 0
  %143 = vmatpush.bf16.msra.mxu0 0
  %144 = vmatpush.bf16.msra.mxu0 0
  %145 = vmatpush.bf16.msra.mxu0 0
  %146 = vmatpush.bf16.msra.mxu0 %v70
  %147 = vmatpush.bf16.msra.mxu0 %v69
  %148 = vmatmul.bf16.gmra.mxu0 %v138
  %v149 = vpop.f32.mrf.mxu0
  %v150 = vadd.f32 %v21, %v149
  %v151 = vpop.f32.mrf.mxu0
  %v152 = vadd.f32 %v22, %v151
  %153 = vdwg.mxu0
  %v154 = vld [vmem:[%s2 + $0x4] sm:$0x1]
  %v155 = vperm.slane %v154, 0
  %v156 = vadd.f32 %v150, %v155
  %v157 = vadd.f32 %v152, %v155
  %v158 = vtanh.pop %v156
  %v159 = vtanh.pop %v157
  %v160 = vpack.c.bf16 %v159, %v158
  %v162 = vsel %vm73, %v160, 0
  %164 = vmatpush.bf16.msra.mxu0 0
  %165 = vmatpush.bf16.msra.mxu0 0
  %166 = vmatpush.bf16.msra.mxu0 0
  %167 = vmatpush.bf16.msra.mxu0 0
  %168 = vmatpush.bf16.msra.mxu0 0
  %169 = vmatpush.bf16.msra.mxu0 0
  %170 = vmatpush.bf16.msra.mxu0 %v107
  %171 = vmatpush.bf16.msra.mxu0 %v106
  %172 = vmatmul.bf16.gmra.mxu0 %v162
  %v173 = vpop.f32.mrf.mxu0
  %v174 = vadd.f32 0.0, %v173
  %v175 = vpop.f32.mrf.mxu0
  %v176 = vadd.f32 0.0, %v175
  %177 = vdwg.mxu0
  %v178 = vadd.f32 %v134, %v174
  %v179 = vadd.f32 %v135, %v176
  %v180 = vadd.f32 %v178, %v129
  %v181 = vadd.f32 %v179, %v129
  %v182 = vmul.f32 %v180, %v54
  %v183 = vmul.f32 %v181, %v55
  %v184 = vadd.f32 %v182, %v18
  %v185 = vadd.f32 %v183, %v19
  %v186 = vpack.c.bf16 %v185, %v184
  %v188 = vsel %vm73, %v186, 0
  %190 = vmatpush.bf16.msra.mxu0 0
  %191 = vmatpush.bf16.msra.mxu0 0
  %192 = vmatpush.bf16.msra.mxu0 0
  %193 = vmatpush.bf16.msra.mxu0 0
  %194 = vmatpush.bf16.msra.mxu0 0
  %195 = vmatpush.bf16.msra.mxu0 0
  %196 = vmatpush.bf16.msra.mxu0 %v70
  %197 = vmatpush.bf16.msra.mxu0 %v69
  %198 = vmatmul.bf16.gmra.mxu0 %v188
  %v199 = vpop.f32.mrf.mxu0
  %v200 = vadd.f32 %v21, %v199
  %v201 = vpop.f32.mrf.mxu0
  %v202 = vadd.f32 %v22, %v201
  %203 = vdwg.mxu0
  %v204 = vld [vmem:[%s2 + $0x5] sm:$0x1]
  %v205 = vperm.slane %v204, 0
  %v206 = vadd.f32 %v200, %v205
  %v207 = vadd.f32 %v202, %v205
  %v208 = vtanh.pop %v206
  %v209 = vtanh.pop %v207
  %v210 = vpack.c.bf16 %v209, %v208
  %v212 = vsel %vm73, %v210, 0
  %214 = vmatpush.bf16.msra.mxu0 0
  %215 = vmatpush.bf16.msra.mxu0 0
  %216 = vmatpush.bf16.msra.mxu0 0
  %217 = vmatpush.bf16.msra.mxu0 0
  %218 = vmatpush.bf16.msra.mxu0 0
  %219 = vmatpush.bf16.msra.mxu0 0
  %220 = vmatpush.bf16.msra.mxu0 %v107
  %221 = vmatpush.bf16.msra.mxu0 %v106
  %222 = vmatmul.bf16.gmra.mxu0 %v212
  %v223 = vpop.f32.mrf.mxu0
  %v224 = vadd.f32 0.0, %v223
  %v225 = vpop.f32.mrf.mxu0
  %v226 = vadd.f32 0.0, %v225
  %227 = vdwg.mxu0
  %v228 = vadd.f32 %v184, %v224
  %v229 = vadd.f32 %v185, %v226
  %v230 = vadd.f32 %v228, %v129
  %v231 = vadd.f32 %v229, %v129
  %v232 = vmul.f32 %v230, %v54
  %v233 = vmul.f32 %v231, %v55
  %v234 = vadd.f32 %v232, %v18
  %v235 = vadd.f32 %v233, %v19
  %v236 = vpack.c.bf16 %v235, %v234
  %v238 = vsel %vm73, %v236, 0
  %240 = vmatpush.bf16.msra.mxu0 0
  %241 = vmatpush.bf16.msra.mxu0 0
  %242 = vmatpush.bf16.msra.mxu0 0
  %243 = vmatpush.bf16.msra.mxu0 0
  %244 = vmatpush.bf16.msra.mxu0 0
  %245 = vmatpush.bf16.msra.mxu0 0
  %246 = vmatpush.bf16.msra.mxu0 %v70
  %247 = vmatpush.bf16.msra.mxu0 %v69
  %248 = vmatmul.bf16.gmra.mxu0 %v238
  %v249 = vpop.f32.mrf.mxu0
  %v250 = vadd.f32 %v21, %v249
  %v251 = vpop.f32.mrf.mxu0
  %v252 = vadd.f32 %v22, %v251
  %253 = vdwg.mxu0
  %v254 = vld [vmem:[%s2 + $0x6] sm:$0x1]
  %v255 = vperm.slane %v254, 0
  %v256 = vadd.f32 %v250, %v255
  %v257 = vadd.f32 %v252, %v255
  %v258 = vtanh.pop %v256
  %v259 = vtanh.pop %v257
  %v260 = vpack.c.bf16 %v259, %v258
  %v262 = vsel %vm73, %v260, 0
  %264 = vmatpush.bf16.msra.mxu0 0
  %265 = vmatpush.bf16.msra.mxu0 0
  %266 = vmatpush.bf16.msra.mxu0 0
  %267 = vmatpush.bf16.msra.mxu0 0
  %268 = vmatpush.bf16.msra.mxu0 0
  %269 = vmatpush.bf16.msra.mxu0 0
  %270 = vmatpush.bf16.msra.mxu0 %v107
  %271 = vmatpush.bf16.msra.mxu0 %v106
  %272 = vmatmul.bf16.gmra.mxu0 %v262
  %v273 = vpop.f32.mrf.mxu0
  %v274 = vadd.f32 0.0, %v273
  %v275 = vpop.f32.mrf.mxu0
  %v276 = vadd.f32 0.0, %v275
  %277 = vdwg.mxu0
  %v278 = vadd.f32 %v234, %v274
  %v279 = vadd.f32 %v235, %v276
  %v280 = vadd.f32 %v278, %v129
  %v281 = vadd.f32 %v279, %v129
  %v282 = vmul.f32 %v280, %v54
  %v283 = vmul.f32 %v281, %v55
  %v284 = vadd.f32 %v282, %v18
  %v285 = vadd.f32 %v283, %v19
  %v286 = vmax.f32 %v284, -1.0
  %v287 = vmax.f32 %v285, -1.0
  %v288 = vmin.f32 %v286, 1.0
  %v289 = vmin.f32 %v287, 1.0
  %v290 = vperm.slane %v33, 0
  %v291 = vmul.f32 %v288, %v290
  %v292 = vmul.f32 %v289, %v290
  %v293 = vperm.slane %v34, 0
  %v294 = vadd.f32 %v291, %v293
  %v295 = vadd.f32 %v292, %v293
  %296 = vst.msk [vmem:[%s3] sm:$0xff] %vm73, %v294
  %297 = vst.msk [vmem:[%s3 + $0x8] sm:$0xff] %vm73, %v295
  // Predicated region
  $region14: #{policy_act.1} parent=0 // pred_check
    _
  $region15: #{policy_act.1} parent=0 // pred_check_branch
    %299 = sbr.rel (0) target = $region17
  $region16: #{policy_act.1} parent=0 // pred_region
    _
  $region17: #{policy_act.1} parent=0 // pred_fallthru
    _
  // Predicated region
  $region18: #{policy_act.1} parent=0 // pred_check
    _
  $region19: #{policy_act.1} parent=0 // pred_check_branch
    %301 = sbr.rel (0) target = $region21
  $region20: #{policy_act.1} parent=0 // pred_region
    _
  $region21: #{policy_act.1} parent=0 // pred_fallthru
    _

</llo_original>
